<compile_context>
chip_gen: v7x
topology: tpu7x:2x2x1
jax: 0.10.0
libtpu: 0.0.40
codegen_flags: <defaults>
</compile_context>

<pallas_src>
import math
import functools

import jax
import jax.numpy as jnp
from jax.experimental import pallas as pl
from jax.experimental.pallas import tpu as pltpu


def _round_up(x, m):
    return ((x + m - 1) // m) * m


def _vmem_capacity_bytes():
    """Per-core VMEM capacity; conservative (v7x-sized) fallback if unknown."""
    try:
        info = pltpu.get_tpu_info()
        cap = int(getattr(info, "vmem_capacity_bytes", 0))
        if cap > 0:
            return cap
    except Exception:
        pass
    return 64 * 2**20


def _channel_conv_sigmoid(pooled, w_ref, *, kernel_size, num_channels):
    """k-tap 1-D conv along the channel (sublane) axis, zero padding, no bias,
    followed by sigmoid.

    pooled: (Bt, C, 1) float32, channels on sublanes.
    w_ref:  SMEM ref of shape (k,) float32.

    Implemented as k static pltpu.roll sublane shifts + VPU FMAs (XLU slot is
    otherwise idle here), masking wrapped rows to emulate the zero padding.
    """
    k = kernel_size
    c = num_channels
    pad = k // 2
    c_idx = jax.lax.broadcasted_iota(jnp.int32, pooled.shape, 1)
    y = jnp.zeros_like(pooled)
    for j in range(k):                      # k is tiny (3..7) and static
        off = j - pad                       # want shifted[c] = pooled[c + off]
        if off == 0:
            y = y + w_ref[j] * pooled
        else:
            shifted = pltpu.roll(pooled, shift=(-off) % c, axis=1)
            valid = (c_idx + off >= 0) & (c_idx + off < c)
            y = y + w_ref[j] * jnp.where(valid, shifted, 0.0)
    return jax.nn.sigmoid(y)


# --------------------------- single-pass (fused) ---------------------------

def _eca_fused_kernel(w_ref, x_ref, o_ref, *, kernel_size, true_hw):
    x = x_ref[...]                                       # (Bt, C, HWp), native dtype
    c = x.shape[1]
    # Global average pool over the lane-dense spatial axis with f32 accumulation.
    # Any spatial zero-padding does not perturb the sum; divide by the true H*W.
    pooled = jnp.sum(x, axis=-1, keepdims=True, dtype=jnp.float32) * (1.0 / true_hw)
    attn = _channel_conv_sigmoid(pooled, w_ref,
                                 kernel_size=kernel_size, num_channels=c)
    # Gate: native-dtype VPU sublane-broadcast multiply along lanes.
    # TODO(synk): attn is rounded to x.dtype before the multiply (tiny deviation
    #             from an f32-gated reference for bf16/fp8 inputs).
    o_ref[...] = x * attn.astype(x.dtype)


# --------------------------- two-pass fallback ------------------------------

def _eca_pool_kernel(w_ref, x_ref, attn_ref, acc_ref, *, kernel_size, true_hw):
    t = pl.program_id(1)

    @pl.when(t == 0)
    def _():
        acc_ref[...] = jnp.zeros_like(acc_ref)

    acc_ref[...] += jnp.sum(x_ref[...], axis=-1, keepdims=True, dtype=jnp.float32)

    @pl.when(t == pl.num_programs(1) - 1)
    def _():
        pooled = acc_ref[...] * (1.0 / true_hw)          # (1, C, 1) f32
        attn_ref[...] = _channel_conv_sigmoid(
            pooled, w_ref, kernel_size=kernel_size, num_channels=pooled.shape[1])


def _eca_scale_kernel(attn_ref, x_ref, o_ref):
    o_ref[...] = x_ref[...] * attn_ref[...].astype(o_ref.dtype)


# ------------------------------- wrapper ------------------------------------

def eca_attention(x, weight, kernel_size, *, force_two_pass=False):
    """x: (B, C, H, W); weight: Conv1d weight of shape (1, 1, k)/(1, k)/(k,)."""
    B, C, H, W = x.shape
    assert kernel_size % 2 == 1, "only the odd-kernel (no-trim) ECA path is implemented"
    # TODO(synk): even kernel_size (PyTorch conv output length C+1 plus the
    #             257->256 / 129->128 trims) is not implemented.
    HW = H * W
    itemsize = jnp.dtype(x.dtype).itemsize
    w = jnp.asarray(weight, jnp.float32).reshape(-1)
    assert w.shape[0] == kernel_size

    vmem_cap = _vmem_capacity_bytes()
    vmem_ceiling = max(vmem_cap * 3 // 4, 24 * 2**20)     # leave compiler headroom
    max_block_bytes = max(vmem_ceiling // 6, 1 << 20)

    # Lane-dense layout: keep the spatial axis on lanes; pad to a 128 multiple
    # so stores are unmasked vst (divisor for the mean stays the true H*W).
    HWp = _round_up(HW, 128)
    per_elem_bytes = C * HWp * itemsize

    # Batch tile: amortize per-grid-step overhead for small slabs.
    Bt = 1
    for d in range(B, 0, -1):
        if B % d == 0 and d * per_elem_bytes <= max_block_bytes:
            Bt = d
            break

    single_pass_vmem = 4 * Bt * per_elem_bytes + (1 << 20)   # in+out double-buffered
    use_two_pass = force_two_pass or (single_pass_vmem > vmem_ceiling)

    if not use_two_pass:
        x_flat = x.reshape(B, C, HW)
        if HWp != HW:
            x_flat = jnp.pad(x_flat, ((0, 0), (0, 0), (0, HWp - HW)))
        kern = functools.partial(_eca_fused_kernel,
                                 kernel_size=kernel_size, true_hw=HW)
        out_flat = pl.pallas_call(
            kern,
            out_shape=jax.ShapeDtypeStruct((B, C, HWp), x.dtype),
            grid=(B // Bt,),
            in_specs=[
                pl.BlockSpec(memory_space=pltpu.MemorySpace.SMEM),     # (k,) weights
                pl.BlockSpec((Bt, C, HWp), lambda b: (b, 0, 0)),
            ],
            out_specs=pl.BlockSpec((Bt, C, HWp), lambda b: (b, 0, 0)),
            compiler_params=pltpu.CompilerParams(
                dimension_semantics=("parallel",),
                vmem_limit_bytes=int(min(max(single_pass_vmem, 32 * 2**20),
                                         vmem_ceiling)),
            ),
            cost_estimate=pl.CostEstimate(
                flops=int(2 * B * C * HWp + 2 * B * C * kernel_size),
                transcendentals=int(B * C),
                bytes_accessed=int(2 * B * C * HWp * itemsize),
            ),
        )(w, x_flat)
        return out_flat[..., :HW].reshape(B, C, H, W)

    # ----- two-pass path: slab too big for VMEM (or forced for testing) -----
    # Pass 1: pool + conv + sigmoid -> attn (B, C, 1) f32, spatial reduction grid.
    # Pass 2: spatially tiled gate multiply (both grid axes parallel -> feeds
    #         both v7x TensorCores).
    t_max = max(128, (max_block_bytes // max(C * itemsize, 1)) // 128 * 128)
    T = min(_round_up(HW, 128), t_max)                   # lane tile, 128 multiple
    HWp2 = _round_up(HW, T)
    n_t = HWp2 // T

    x_flat = x.reshape(B, C, HW)
    if HWp2 != HW:
        x_flat = jnp.pad(x_flat, ((0, 0), (0, 0), (0, HWp2 - HW)))

    pool_kern = functools.partial(_eca_pool_kernel,
                                  kernel_size=kernel_size, true_hw=HW)
    attn = pl.pallas_call(
        pool_kern,
        out_shape=jax.ShapeDtypeStruct((B, C, 1), jnp.float32),
        grid=(B, n_t),
        in_specs=[
            pl.BlockSpec(memory_space=pltpu.MemorySpace.SMEM),          # (k,) weights
            pl.BlockSpec((1, C, T), lambda b, t: (b, 0, t)),
        ],
        out_specs=pl.BlockSpec((1, C, 1), lambda b, t: (b, 0, 0)),
        scratch_shapes=[pltpu.VMEM((1, C, 1), jnp.float32)],
        compiler_params=pltpu.CompilerParams(
            dimension_semantics=("parallel", "arbitrary"),
            vmem_limit_bytes=int(min(max(4 * C * T * itemsize + (1 << 20),
                                         32 * 2**20), vmem_ceiling)),
        ),
        cost_estimate=pl.CostEstimate(
            flops=int(B * C * HWp2 + 2 * B * C * kernel_size),
            transcendentals=int(B * C),
            bytes_accessed=int(B * C * HWp2 * itemsize + B * C * 4),
        ),
    )(w, x_flat)

    out_flat = pl.pallas_call(
        _eca_scale_kernel,
        out_shape=jax.ShapeDtypeStruct((B, C, HWp2), x.dtype),
        grid=(B, n_t),
        in_specs=[
            pl.BlockSpec((1, C, 1), lambda b, t: (b, 0, 0)),
            pl.BlockSpec((1, C, T), lambda b, t: (b, 0, t)),
        ],
        out_specs=pl.BlockSpec((1, C, T), lambda b, t: (b, 0, t)),
        compiler_params=pltpu.CompilerParams(
            dimension_semantics=("parallel", "parallel"),
            vmem_limit_bytes=int(min(max(6 * C * T * itemsize + (1 << 20),
                                         32 * 2**20), vmem_ceiling)),
        ),
        cost_estimate=pl.CostEstimate(
            flops=int(B * C * HWp2),
            transcendentals=0,
            bytes_accessed=int(2 * B * C * HWp2 * itemsize + B * C * 4),
        ),
    )(attn, x_flat)
    return out_flat[..., :HW].reshape(B, C, H, W)


# ------------------------------- reference ----------------------------------

def _eca_reference(x, weight, kernel_size):
    """Plain-JAX reference matching the PyTorch forward (odd-kernel path)."""
    B, C, H, W = x.shape
    pooled = jnp.mean(x, axis=(2, 3))                                    # (B, C)
    pad = kernel_size // 2
    pp = jnp.pad(pooled, ((0, 0), (pad, pad)))
    w = jnp.asarray(weight, jnp.float32).reshape(-1)
    y = sum(w[j] * pp[:, j:j + C] for j in range(kernel_size))           # (B, C)
    attn = jax.nn.sigmoid(y)
    return x * attn[:, :, None, None]


if __name__ == "__main__":
    # Module hyperparameters (mirrors ECAAttention.__init__)
    in_channel, b_param, gama = 32, 1, 2
    kernel_size = int(abs((math.log(in_channel, 2) + b_param) / gama))   # = 3 for C=32
    # (the PyTorch odd/even branch is a no-op, kept as-is)

    B, C, H, W = 2, in_channel, 16, 16

    key = jax.random.PRNGKey(0)
    kx, kw = jax.random.split(key)
    x = jax.random.normal(kx, (B, C, H, W), dtype=jnp.float32)

    # Conv1d(1, 1, k, bias=False) default init: U(-1/sqrt(k), 1/sqrt(k)), shape (1,1,k).
    bound = 1.0 / math.sqrt(kernel_size)
    weight = jax.random.uniform(kw, (1, 1, kernel_size), dtype=jnp.float32,
                                minval=-bound, maxval=bound)

    ref = _eca_reference(x, weight, kernel_size)

    # Single-pass (fused) path.
    out = jax.block_until_ready(eca_attention(x, weight, kernel_size))
    assert out.shape == (B, C, H, W) and out.dtype == x.dtype
    assert jnp.allclose(out, ref, atol=1e-5, rtol=1e-5), "single-pass mismatch vs reference"

    # Exercise the large-slab two-pass fallback on the same small input.
    out2 = jax.block_until_ready(
        eca_attention(x, weight, kernel_size, force_two_pass=True))
    assert out2.shape == (B, C, H, W) and out2.dtype == x.dtype
    assert jnp.allclose(out2, ref, atol=1e-5, rtol=1e-5), "two-pass mismatch vs reference"

    print("KERNEL_OK")
</pallas_src>

<mosaic_0001>
module attributes {stable_mosaic.version = 11 : i64} {
  func.func @_eca_fused_kernel(%arg0: i32, %arg1: memref<3xf32, #tpu.memory_space<smem>>, %arg2: memref<2x32x256xf32, #tpu.memory_space<vmem>>, %arg3: memref<2x32x256xf32, #tpu.memory_space<vmem>>) attributes {dimension_semantics = [#tpu.dimension_semantics<parallel>], iteration_bounds = array<i64: 1>, scalar_prefetch = 0 : i64, scratch_operands = 0 : i64, tpu.core_type = #tpu.core_type<tc>, window_params = [{transform_indices = @transform_0, window_bounds = array<i64: 3>}, {transform_indices = @transform_1, window_bounds = array<i64: 2, 32, 256>}, {transform_indices = @transform_2, window_bounds = array<i64: 2, 32, 256>}]} {
    %c0 = arith.constant 0 : index
    %c0_0 = arith.constant 0 : index
    %c0_1 = arith.constant 0 : index
    %0 = vector.load %arg2[%c0, %c0_0, %c0_1] : memref<2x32x256xf32, #tpu.memory_space<vmem>>, vector<2x32x256xf32>
    %cst = arith.constant dense<0.000000e+00> : vector<2x32xf32>
    %1 = vector.multi_reduction <add>, %0, %cst [2] : vector<2x32x256xf32> to vector<2x32xf32>
    %2 = vector.shape_cast %1 : vector<2x32xf32> to vector<2x32x1xf32>
    %cst_2 = arith.constant 3.906250e-03 : f32
    %3 = vector.broadcast %cst_2 : f32 to vector<2x32x1xf32>
    %4 = arith.mulf %2, %3 : vector<2x32x1xf32>
    %5 = tpu.iota {dimensions = array<i32: 1>} : vector<2x32x1xi32>
    %cst_3 = arith.constant 0.000000e+00 : f32
    %6 = vector.broadcast %cst_3 : f32 to vector<2x32x1xf32>
    %c1_i32 = arith.constant 1 : i32
    %7 = tpu.dynamic_rotate %4 by %c1_i32 dim 1 : vector<2x32x1xf32>, i32 -> vector<2x32x1xf32>
    %c-1_i32 = arith.constant -1 : i32
    %8 = vector.broadcast %c-1_i32 : i32 to vector<2x32x1xi32>
    %9 = arith.addi %5, %8 : vector<2x32x1xi32>
    %c0_i32 = arith.constant 0 : i32
    %10 = vector.broadcast %c0_i32 : i32 to vector<2x32x1xi32>
    %11 = arith.cmpi sge, %9, %10 : vector<2x32x1xi32>
    %c-1_i32_4 = arith.constant -1 : i32
    %12 = vector.broadcast %c-1_i32_4 : i32 to vector<2x32x1xi32>
    %13 = arith.addi %5, %12 : vector<2x32x1xi32>
    %c32_i32 = arith.constant 32 : i32
    %14 = vector.broadcast %c32_i32 : i32 to vector<2x32x1xi32>
    %15 = arith.cmpi slt, %13, %14 : vector<2x32x1xi32>
    %16 = arith.andi %11, %15 : vector<2x32x1xi1>
    %c0_5 = arith.constant 0 : index
    %17 = memref.load %arg1[%c0_5] : memref<3xf32, #tpu.memory_space<smem>>
    %cst_6 = arith.constant 0.000000e+00 : f32
    %18 = vector.broadcast %cst_6 : f32 to vector<2x32x1xf32>
    %19 = arith.select %16, %7, %18 : vector<2x32x1xi1>, vector<2x32x1xf32>
    %20 = vector.broadcast %17 : f32 to vector<2x32x1xf32>
    %21 = arith.mulf %20, %19 : vector<2x32x1xf32>
    %22 = arith.addf %6, %21 : vector<2x32x1xf32>
    %c1 = arith.constant 1 : index
    %23 = memref.load %arg1[%c1] : memref<3xf32, #tpu.memory_space<smem>>
    %24 = vector.broadcast %23 : f32 to vector<2x32x1xf32>
    %25 = arith.mulf %24, %4 : vector<2x32x1xf32>
    %26 = arith.addf %22, %25 : vector<2x32x1xf32>
    %c31_i32 = arith.constant 31 : i32
    %27 = tpu.dynamic_rotate %4 by %c31_i32 dim 1 : vector<2x32x1xf32>, i32 -> vector<2x32x1xf32>
    %c1_i32_7 = arith.constant 1 : i32
    %28 = vector.broadcast %c1_i32_7 : i32 to vector<2x32x1xi32>
    %29 = arith.addi %5, %28 : vector<2x32x1xi32>
    %c0_i32_8 = arith.constant 0 : i32
    %30 = vector.broadcast %c0_i32_8 : i32 to vector<2x32x1xi32>
    %31 = arith.cmpi sge, %29, %30 : vector<2x32x1xi32>
    %c1_i32_9 = arith.constant 1 : i32
    %32 = vector.broadcast %c1_i32_9 : i32 to vector<2x32x1xi32>
    %33 = arith.addi %5, %32 : vector<2x32x1xi32>
    %c32_i32_10 = arith.constant 32 : i32
    %34 = vector.broadcast %c32_i32_10 : i32 to vector<2x32x1xi32>
    %35 = arith.cmpi slt, %33, %34 : vector<2x32x1xi32>
    %36 = arith.andi %31, %35 : vector<2x32x1xi1>
    %c2 = arith.constant 2 : index
    %37 = memref.load %arg1[%c2] : memref<3xf32, #tpu.memory_space<smem>>
    %cst_11 = arith.constant 0.000000e+00 : f32
    %38 = vector.broadcast %cst_11 : f32 to vector<2x32x1xf32>
    %39 = arith.select %36, %27, %38 : vector<2x32x1xi1>, vector<2x32x1xf32>
    %40 = vector.broadcast %37 : f32 to vector<2x32x1xf32>
    %41 = arith.mulf %40, %39 : vector<2x32x1xf32>
    %42 = arith.addf %26, %41 : vector<2x32x1xf32>
    %43 = arith.negf %42 : vector<2x32x1xf32>
    %44 = math.exp %43 : vector<2x32x1xf32>
    %cst_12 = arith.constant 1.000000e+00 : f32
    %45 = vector.broadcast %cst_12 : f32 to vector<2x32x1xf32>
    %46 = arith.addf %45, %44 : vector<2x32x1xf32>
    %47 = arith.divf %45, %46 : vector<2x32x1xf32>
    %48 = vector.broadcast %47 : vector<2x32x1xf32> to vector<2x32x256xf32>
    %49 = arith.mulf %0, %48 : vector<2x32x256xf32>
    %c0_13 = arith.constant 0 : index
    %c0_14 = arith.constant 0 : index
    %c0_15 = arith.constant 0 : index
    %50 = vector.load %arg3[%c0_13, %c0_14, %c0_15] : memref<2x32x256xf32, #tpu.memory_space<vmem>>, vector<2x32x256xf32>
    tpu.vector_store %arg3[%c0_13, %c0_14, %c0_15], %49 {strides = array<i32>} : memref<2x32x256xf32, #tpu.memory_space<vmem>>, vector<2x32x256xf32>,
    return
  }
  func.func @transform_0(%arg0: i32) -> i32 {
    %c0_i32 = arith.constant 0 : i32
    %c0_i32_0 = arith.constant 0 : i32
    return %c0_i32 : i32
  }
  func.func @transform_1(%arg0: i32) -> (i32, i32, i32) {
    %c0_i32 = arith.constant 0 : i32
    %c0_i32_0 = arith.constant 0 : i32
    %c0_i32_1 = arith.constant 0 : i32
    return %arg0, %c0_i32, %c0_i32_0 : i32, i32, i32
  }
  func.func @transform_2(%arg0: i32) -> (i32, i32, i32) {
    %c0_i32 = arith.constant 0 : i32
    %c0_i32_0 = arith.constant 0 : i32
    %c0_i32_1 = arith.constant 0 : i32
    return %arg0, %c0_i32, %c0_i32_0 : i32, i32, i32
  }
}

</mosaic_0001>

<llo_original>
// kernel: tpu_custom_call.1
$region0: #{tpu_custom_call.1}
  #allocation0 [shape = 'u32[]', space=smem, size = 0x4, offset = 0x4, fixed_abs, tag = 'smem constant byte address 0x4 - core index']
  #allocation1 [shape = 'u32[144,128]{1,0:T(1,128)}', space=vmem, size = 0x12000, scoped, tag = 'internal scratch']
  %s0 = inlined_call_operand.hbm [shape: f32[3], index: 0, kind: input, shape index: {}]
  %s1 = inlined_call_operand.hbm [shape: f32[2,32,256], index: 1, kind: input, shape index: {}]
  %s2 = inlined_call_operand.hbm [shape: f32[2,32,256], index: 2, kind: output, shape index: {}]
  %s3 = sld [smem:[#allocation0]]
  $region26: #{tpu_custom_call.1} parent=0
    _
  %s5 = ssub.s32 1, %s3
  %s6 = scalar_select 0, %s5, %s3
  $region1: #{tpu_custom_call.1} parent=0
    #allocation2 [shape = 'u8[512]{0}', space=smem, size = 0x200, scoped, tag = 'input window, operand 0, single buffered']
    #allocation3 [shape = 's32[1]{0}', space=sflag, size = 0x4, scoped, tag = 'scoped memory for tpu_custom_call.1']
    #allocation4 [shape = 's32[1]{0}', space=sflag, size = 0x4, scoped, tag = 'scoped memory for tpu_custom_call.1']
    #allocation5 [shape = 's32[1]{0}', space=sflag, size = 0x4, scoped, tag = 'scoped memory for tpu_custom_call.1']
    #allocation6 [shape = 'u8[65536]{0}', space=vmem, size = 0x10000, scoped, tag = 'input window, operand 1, single buffered']
    #allocation7 [shape = 'u8[65536]{0}', space=vmem, size = 0x10000, scoped, tag = 'output window, operand 0, single buffered']
    %7 = vsyncpa [#allocation5], 0
    %8 = vsyncpa [#allocation3], 0
    %9 = vsyncpa [#allocation4], 0
    // Predicated region
    $region2: #{tpu_custom_call.1} parent=1 // pred_check
      _
    $region3: #{tpu_custom_call.1} parent=1 // pred_check_branch
      %11 = sbr.rel (0) target = $region5
    $region4: #{tpu_custom_call.1} parent=1 // pred_region
      %s13 = ssub.s32 16, 16
      %14 = vsyncadd [#allocation5], %s13
      %17 = dma.hbm_to_smem %s0, 16, [#allocation2], [#allocation5]
    $region5: #{tpu_custom_call.1} parent=1 // pred_fallthru
      _
    // Predicated region
    $region6: #{tpu_custom_call.1} parent=1 // pred_check
      _
    $region7: #{tpu_custom_call.1} parent=1 // pred_check_branch
      %19 = sbr.rel (0) target = $region9
    $region8: #{tpu_custom_call.1} parent=1 // pred_region
      %s21 = ssub.s32 2048, 2048
      %22 = vsyncadd [#allocation3], %s21
      %s23 = sshll.u32 [#allocation6], 4
      %s24 = int_to_ptr.vmem [resolvable:$true] %s23
      %29 = dma.hbm_to_vmem [thread:$0]  %s1, 2048, %s24, [#allocation3], 256, 256, 16
    $region9: #{tpu_custom_call.1} parent=1 // pred_fallthru
      _
    // Predicated region
    $region10: #{tpu_custom_call.1} parent=1 // pred_check
      _
    $region11: #{tpu_custom_call.1} parent=1 // pred_check_branch
      %31 = sbr.rel (0) target = $region13
    $region12: #{tpu_custom_call.1} parent=1 // pred_region
      %32 = dma.done [#allocation5], 16
    $region13: #{tpu_custom_call.1} parent=1 // pred_fallthru
      _
    // Predicated region
    $region14: #{tpu_custom_call.1} parent=1 // pred_check
      _
    $region15: #{tpu_custom_call.1} parent=1 // pred_check_branch
      %34 = sbr.rel (0) target = $region17
    $region16: #{tpu_custom_call.1} parent=1 // pred_region
      %35 = dma.done [#allocation3], 2048
    $region17: #{tpu_custom_call.1} parent=1 // pred_fallthru
      _
    %36 = sfence
    %v37 = vld [vmem:[#allocation6] sm:$0xff]
    %v38 = vld [vmem:[#allocation6 + $0x8] sm:$0xff]
    %v39 = vld [vmem:[#allocation6 + $0x10] sm:$0xff]
    %v40 = vld [vmem:[#allocation6 + $0x18] sm:$0xff]
    %v41 = vld [vmem:[#allocation6 + $0x20] sm:$0xff]
    %v42 = vld [vmem:[#allocation6 + $0x28] sm:$0xff]
    %v43 = vld [vmem:[#allocation6 + $0x30] sm:$0xff]
    %v44 = vld [vmem:[#allocation6 + $0x38] sm:$0xff]
    %v45 = vld [vmem:[#allocation6 + $0x40] sm:$0xff]
    %v46 = vld [vmem:[#allocation6 + $0x48] sm:$0xff]
    %v47 = vld [vmem:[#allocation6 + $0x50] sm:$0xff]
    %v48 = vld [vmem:[#allocation6 + $0x58] sm:$0xff]
    %v49 = vld [vmem:[#allocation6 + $0x60] sm:$0xff]
    %v50 = vld [vmem:[#allocation6 + $0x68] sm:$0xff]
    %v51 = vld [vmem:[#allocation6 + $0x70] sm:$0xff]
    %v52 = vld [vmem:[#allocation6 + $0x78] sm:$0xff]
    %v53 = vadd.f32 %v37, %v38
    %54 = vadd.xlane.f32.xlu0 %v53
    %v55 = vpop.xlane.xlu0 %54
    %v56 = vadd.f32 %v39, %v40
    %57 = vadd.xlane.f32.xlu0 %v56
    %v58 = vpop.xlane.xlu0 %57
    %v59 = vadd.f32 %v41, %v42
    %60 = vadd.xlane.f32.xlu0 %v59
    %v61 = vpop.xlane.xlu0 %60
    %v62 = vadd.f32 %v43, %v44
    %63 = vadd.xlane.f32.xlu0 %v62
    %v64 = vpop.xlane.xlu0 %63
    %v65 = vadd.f32 %v45, %v46
    %66 = vadd.xlane.f32.xlu0 %v65
    %v67 = vpop.xlane.xlu0 %66
    %v68 = vadd.f32 %v47, %v48
    %69 = vadd.xlane.f32.xlu0 %v68
    %v70 = vpop.xlane.xlu0 %69
    %v71 = vadd.f32 %v49, %v50
    %72 = vadd.xlane.f32.xlu0 %v71
    %v73 = vpop.xlane.xlu0 %72
    %v74 = vadd.f32 %v51, %v52
    %75 = vadd.xlane.f32.xlu0 %v74
    %v76 = vpop.xlane.xlu0 %75
    %v77 = vmul.f32 %v55, 0.00390625
    %v78 = vmul.f32 %v58, 0.00390625
    %v79 = vmul.f32 %v61, 0.00390625
    %v80 = vmul.f32 %v64, 0.00390625
    %v81 = vmul.f32 %v67, 0.00390625
    %v82 = vmul.f32 %v70, 0.00390625
    %v83 = vmul.f32 %v73, 0.00390625
    %v84 = vmul.f32 %v76, 0.00390625
    %v85 = vlaneseq
    %v86 = vshrl.u32 %v85, 7
    %v87 = vadd.s32 %v86, 8
    %v88 = vadd.s32 %v86, 16
    %v89 = vadd.s32 %v86, 24
    %v90 = vrot.slane %v77, 7
    %v91 = vrot.slane %v81, 7
    %v92 = vrot.slane %v78, 7
    %v93 = vrot.slane %v82, 7
    %v94 = vrot.slane %v79, 7
    %v95 = vrot.slane %v83, 7
    %v96 = vrot.slane %v80, 7
    %v97 = vrot.slane %v84, 7
    %vm98 = vcmp.lt.s32.totalorder %v86, 1
    %v99 = vsel %vm98, %v94, %v96
    %v100 = vsel %vm98, %v95, %v97
    %v101 = vsel %vm98, %v92, %v94
    %v102 = vsel %vm98, %v93, %v95
    %v103 = vsel %vm98, %v90, %v92
    %v104 = vsel %vm98, %v91, %v93
    %v105 = vsel %vm98, %v96, %v90
    %v106 = vsel %vm98, %v97, %v91
    %v107 = vadd.s32 %v86, 4294967295
    %v108 = vadd.s32 %v87, 4294967295
    %v109 = vadd.s32 %v88, 4294967295
    %v110 = vadd.s32 %v89, 4294967295
    %vm111 = vcmp.ge.s32.totalorder %v107, 0
    %vm112 = vcmp.ge.s32.totalorder %v108, 0
    %vm113 = vcmp.ge.s32.totalorder %v109, 0
    %vm114 = vcmp.ge.s32.totalorder %v110, 0
    %vm115 = vcmp.lt.s32.totalorder %v107, 32
    %vm116 = vcmp.lt.s32.totalorder %v108, 32
    %vm117 = vcmp.lt.s32.totalorder %v109, 32
    %vm118 = vcmp.lt.s32.totalorder %v110, 32
    %vm119 = vmand %vm111, %vm115
    %vm120 = vmand %vm112, %vm116
    %vm121 = vmand %vm113, %vm117
    %vm122 = vmand %vm114, %vm118
    %s123 = sld [smem:[#allocation2]]
    %v124 = vsel %vm119, %v105, 0.0
    %v125 = vsel %vm120, %v103, 0.0
    %v126 = vsel %vm121, %v101, 0.0
    %v127 = vsel %vm122, %v99, 0.0
    %v128 = vsel %vm119, %v106, 0.0
    %v129 = vsel %vm120, %v104, 0.0
    %v130 = vsel %vm121, %v102, 0.0
    %v131 = vsel %vm122, %v100, 0.0
    %v132 = vstv %s123
    %v133 = vmul.f32 %v132, %v124
    %v134 = vmul.f32 %v132, %v125
    %v135 = vmul.f32 %v132, %v126
    %v136 = vmul.f32 %v132, %v127
    %v137 = vmul.f32 %v132, %v128
    %v138 = vmul.f32 %v132, %v129
    %v139 = vmul.f32 %v132, %v130
    %v140 = vmul.f32 %v132, %v131
    %v141 = vadd.f32 %v133, 0.0
    %v142 = vadd.f32 %v134, 0.0
    %v143 = vadd.f32 %v135, 0.0
    %v144 = vadd.f32 %v136, 0.0
    %v145 = vadd.f32 %v137, 0.0
    %v146 = vadd.f32 %v138, 0.0
    %v147 = vadd.f32 %v139, 0.0
    %v148 = vadd.f32 %v140, 0.0
    %s149 = sld [smem:[#allocation2 + $0x1]]
    %v150 = vstv %s149
    %v151 = vmul.f32 %v150, %v77
    %v152 = vmul.f32 %v150, %v78
    %v153 = vmul.f32 %v150, %v79
    %v154 = vmul.f32 %v150, %v80
    %v155 = vmul.f32 %v150, %v81
    %v156 = vmul.f32 %v150, %v82
    %v157 = vmul.f32 %v150, %v83
    %v158 = vmul.f32 %v150, %v84
    %v159 = vadd.f32 %v141, %v151
    %v160 = vadd.f32 %v142, %v152
    %v161 = vadd.f32 %v143, %v153
    %v162 = vadd.f32 %v144, %v154
    %v163 = vadd.f32 %v145, %v155
    %v164 = vadd.f32 %v146, %v156
    %v165 = vadd.f32 %v147, %v157
    %v166 = vadd.f32 %v148, %v158
    %v167 = vrot.slane %v77, 1
    %v168 = vrot.slane %v81, 1
    %v169 = vrot.slane %v78, 1
    %v170 = vrot.slane %v82, 1
    %v171 = vrot.slane %v79, 1
    %v172 = vrot.slane %v83, 1
    %v173 = vrot.slane %v80, 1
    %v174 = vrot.slane %v84, 1
    %vm175 = vcmp.lt.s32.totalorder %v86, 7
    %v176 = vsel %vm175, %v171, %v173
    %v177 = vsel %vm175, %v172, %v174
    %v178 = vsel %vm175, %v169, %v171
    %v179 = vsel %vm175, %v170, %v172
    %v180 = vsel %vm175, %v167, %v169
    %v181 = vsel %vm175, %v168, %v170
    %v182 = vsel %vm175, %v173, %v167
    %v183 = vsel %vm175, %v174, %v168
    %v184 = vadd.s32 %v86, 1
    %v185 = vadd.s32 %v87, 1
    %v186 = vadd.s32 %v88, 1
    %v187 = vadd.s32 %v89, 1
    %vm188 = vcmp.ge.s32.totalorder %v184, 0
    %vm189 = vcmp.ge.s32.totalorder %v185, 0
    %vm190 = vcmp.ge.s32.totalorder %v186, 0
    %vm191 = vcmp.ge.s32.totalorder %v187, 0
    %vm192 = vcmp.lt.s32.totalorder %v184, 32
    %vm193 = vcmp.lt.s32.totalorder %v185, 32
    %vm194 = vcmp.lt.s32.totalorder %v186, 32
    %vm195 = vcmp.lt.s32.totalorder %v187, 32
    %vm196 = vmand %vm188, %vm192
    %vm197 = vmand %vm189, %vm193
    %vm198 = vmand %vm190, %vm194
    %vm199 = vmand %vm191, %vm195
    %s200 = sld [smem:[#allocation2 + $0x2]]
    %v201 = vsel %vm196, %v180, 0.0
    %v202 = vsel %vm197, %v178, 0.0
    %v203 = vsel %vm198, %v176, 0.0
    %v204 = vsel %vm199, %v182, 0.0
    %v205 = vsel %vm196, %v181, 0.0
    %v206 = vsel %vm197, %v179, 0.0
    %v207 = vsel %vm198, %v177, 0.0
    %v208 = vsel %vm199, %v183, 0.0
    %v209 = vstv %s200
    %v210 = vmul.f32 %v209, %v201
    %v211 = vmul.f32 %v209, %v202
    %v212 = vmul.f32 %v209, %v203
    %v213 = vmul.f32 %v209, %v204
    %v214 = vmul.f32 %v209, %v205
    %v215 = vmul.f32 %v209, %v206
    %v216 = vmul.f32 %v209, %v207
    %v217 = vmul.f32 %v209, %v208
    %v218 = vadd.f32 %v159, %v210
    %v219 = vadd.f32 %v160, %v211
    %v220 = vadd.f32 %v161, %v212
    %v221 = vadd.f32 %v162, %v213
    %v222 = vadd.f32 %v163, %v214
    %v223 = vadd.f32 %v164, %v215
    %v224 = vadd.f32 %v165, %v216
    %v225 = vadd.f32 %v166, %v217
    %v226 = vxor.u32 %v218, 2147483648
    %v227 = vxor.u32 %v219, 2147483648
    %v228 = vxor.u32 %v220, 2147483648
    %v229 = vxor.u32 %v221, 2147483648
    %v230 = vxor.u32 %v222, 2147483648
    %v231 = vxor.u32 %v223, 2147483648
    %v232 = vxor.u32 %v224, 2147483648
    %v233 = vxor.u32 %v225, 2147483648
    %v234 = vmul.f32 %v226, 1.442695
    %v235 = vpow.pop %v234
    %v236 = vmul.f32 %v227, 1.442695
    %v237 = vpow.pop %v236
    %v238 = vmul.f32 %v228, 1.442695
    %v239 = vpow.pop %v238
    %v240 = vmul.f32 %v229, 1.442695
    %v241 = vpow.pop %v240
    %v242 = vmul.f32 %v230, 1.442695
    %v243 = vpow.pop %v242
    %v244 = vmul.f32 %v231, 1.442695
    %v245 = vpow.pop %v244
    %v246 = vmul.f32 %v232, 1.442695
    %v247 = vpow.pop %v246
    %v248 = vmul.f32 %v233, 1.442695
    %v249 = vpow.pop %v248
    %v250 = vadd.f32 %v235, 1.0
    %v251 = vadd.f32 %v237, 1.0
    %v252 = vadd.f32 %v239, 1.0
    %v253 = vadd.f32 %v241, 1.0
    %v254 = vadd.f32 %v243, 1.0
    %v255 = vadd.f32 %v245, 1.0
    %v256 = vadd.f32 %v247, 1.0
    %v257 = vadd.f32 %v249, 1.0
    %v258 = vrcp.pop %v250
    %v259 = vmul.f32 1.0, %v258
    %v260 = vrcp.pop %v251
    %v261 = vmul.f32 1.0, %v260
    %v262 = vrcp.pop %v252
    %v263 = vmul.f32 1.0, %v262
    %v264 = vrcp.pop %v253
    %v265 = vmul.f32 1.0, %v264
    %v266 = vrcp.pop %v254
    %v267 = vmul.f32 1.0, %v266
    %v268 = vrcp.pop %v255
    %v269 = vmul.f32 1.0, %v268
    %v270 = vrcp.pop %v256
    %v271 = vmul.f32 1.0, %v270
    %v272 = vrcp.pop %v257
    %v273 = vmul.f32 1.0, %v272
    %275 = vset.pattern.permute.xlu0 0
    %276 = vperm.xlu0 %275, %v259
    %v277 = vpop.permute.xlu0 %276
    %280 = vset.pattern.permute.xlu0 0
    %281 = vperm.xlu0 %280, %v261
    %v282 = vpop.permute.xlu0 %281
    %285 = vset.pattern.permute.xlu0 0
    %286 = vperm.xlu0 %285, %v263
    %v287 = vpop.permute.xlu0 %286
    %290 = vset.pattern.permute.xlu0 0
    %291 = vperm.xlu0 %290, %v265
    %v292 = vpop.permute.xlu0 %291
    %295 = vset.pattern.permute.xlu0 0
    %296 = vperm.xlu0 %295, %v267
    %v297 = vpop.permute.xlu0 %296
    %300 = vset.pattern.permute.xlu0 0
    %301 = vperm.xlu0 %300, %v269
    %v302 = vpop.permute.xlu0 %301
    %305 = vset.pattern.permute.xlu0 0
    %306 = vperm.xlu0 %305, %v271
    %v307 = vpop.permute.xlu0 %306
    %310 = vset.pattern.permute.xlu0 0
    %311 = vperm.xlu0 %310, %v273
    %v312 = vpop.permute.xlu0 %311
    %v314 = vmul.f32 %v37, %v277
    %v315 = vmul.f32 %v38, %v277
    %v316 = vmul.f32 %v39, %v282
    %v317 = vmul.f32 %v40, %v282
    %v318 = vmul.f32 %v41, %v287
    %v319 = vmul.f32 %v42, %v287
    %v320 = vmul.f32 %v43, %v292
    %v321 = vmul.f32 %v44, %v292
    %v322 = vmul.f32 %v45, %v297
    %v323 = vmul.f32 %v46, %v297
    %v324 = vmul.f32 %v47, %v302
    %v325 = vmul.f32 %v48, %v302
    %v326 = vmul.f32 %v49, %v307
    %v327 = vmul.f32 %v50, %v307
    %v328 = vmul.f32 %v51, %v312
    %v329 = vmul.f32 %v52, %v312
    %330 = vst [vmem:[#allocation7] sm:$0xff] %v314
    %331 = vst [vmem:[#allocation7 + $0x8] sm:$0xff] %v315
    %332 = vst [vmem:[#allocation7 + $0x10] sm:$0xff] %v316
    %333 = vst [vmem:[#allocation7 + $0x18] sm:$0xff] %v317
    %334 = vst [vmem:[#allocation7 + $0x20] sm:$0xff] %v318
    %335 = vst [vmem:[#allocation7 + $0x28] sm:$0xff] %v319
    %336 = vst [vmem:[#allocation7 + $0x30] sm:$0xff] %v320
    %337 = vst [vmem:[#allocation7 + $0x38] sm:$0xff] %v321
    %338 = vst [vmem:[#allocation7 + $0x40] sm:$0xff] %v322
    %339 = vst [vmem:[#allocation7 + $0x48] sm:$0xff] %v323
    %340 = vst [vmem:[#allocation7 + $0x50] sm:$0xff] %v324
    %341 = vst [vmem:[#allocation7 + $0x58] sm:$0xff] %v325
    %342 = vst [vmem:[#allocation7 + $0x60] sm:$0xff] %v326
    %343 = vst [vmem:[#allocation7 + $0x68] sm:$0xff] %v327
    %344 = vst [vmem:[#allocation7 + $0x70] sm:$0xff] %v328
    %345 = vst [vmem:[#allocation7 + $0x78] sm:$0xff] %v329
    // Predicated region
    $region18: #{tpu_custom_call.1} parent=1 // pred_check
      _
    $region19: #{tpu_custom_call.1} parent=1 // pred_check_branch
      %347 = sbr.rel (0) target = $region21
    $region20: #{tpu_custom_call.1} parent=1 // pred_region
      %s349 = ssub.s32 2048, 2048
      %350 = vsyncadd [#allocation4], %s349
      %s351 = sshll.u32 [#allocation7], 4
      %s352 = int_to_ptr.vmem [resolvable:$true] %s351
      %357 = dma.vmem_to_hbm [thread:$0]  %s352, 2048, %s2, [#allocation4], 256, 256, 16
    $region21: #{tpu_custom_call.1} parent=1 // pred_fallthru
      _
    // Predicated region
    $region22: #{tpu_custom_call.1} parent=1 // pred_check
      _
    $region23: #{tpu_custom_call.1} parent=1 // pred_check_branch
      %359 = sbr.rel (0) target = $region25
    $region24: #{tpu_custom_call.1} parent=1 // pred_region
      %360 = dma.done [#allocation4], 2048
    $region25: #{tpu_custom_call.1} parent=1 // pred_fallthru
      _
    %361 = vsyncpa [#allocation3], 1
    %362 = vsyncpa [#allocation4], 1
    %363 = vsyncpa [#allocation5], 1

</llo_original>
